<compile_context>
chip_gen: v5e
topology: v5e:2x2
jax: 0.10.0
libtpu: 0.0.40
codegen_flags: <defaults>
</compile_context>

<pallas_src>
import math
from functools import partial

import jax
import jax.numpy as jnp
from jax import lax
from jax.experimental import pallas as pl
from jax.experimental.pallas import tpu as pltpu


def _lista_kernel(num_layers, alpha_ref, x_ref, W_ref, M_ref, c_ref, bT_ref, out_ref):
    # alpha_ref: (1, 1)        f32 SMEM   1 / ||W||_F
    # x_ref    : (tile_n, D)   f32        input rows
    # W_ref    : (D, D)        f32        dictionary W (xw + final reconstruction)
    # M_ref    : (L, D, D)     f32        fused per-layer matrices  Wlin_i^T @ P
    # c_ref    : (L, 1, D)     f32        fused per-layer biases    blin_i @ P
    # bT_ref   : (1, D)        f32        b^T
    # out_ref  : (tile_n, D)   f32
    x = x_ref[...]
    W = W_ref[...]
    alpha = alpha_ref[0, 0]

    # alpha * (x @ W): one MXU matmul + one vector-scalar scale, reused by every layer.
    xw = jnp.dot(x, W, preferred_element_type=jnp.float32) * alpha

    # Layer 0: z_prev == 0, so the z @ M_0 matmul is identically zero -> skip it.
    z = jnp.maximum(c_ref[0] + xw, 0.0)

    # Remaining layers: one MXU matmul + add + ReLU each (statically unrolled).
    for i in range(1, num_layers):
        z = jnp.maximum(
            jnp.dot(z, M_ref[i], preferred_element_type=jnp.float32) + c_ref[i] + xw,
            0.0,
        )

    # x_recon = z @ W + b^T
    out_ref[...] = jnp.dot(z, W, preferred_element_type=jnp.float32) + bT_ref[...]


def _pick_tile_n(n):
    for t in (512, 256, 128, 64, 32, 16, 8):
        if n % t == 0:
            return t
    return n  # fall back to a full-extent block


def adaptive_lista_forward(x_nchw, W, Wlin, blin, b):
    """x_nchw: NCHW input (any B, C with H*W == input_size).
    Returns (N, 1, sqrt(input_size), sqrt(input_size)), N = B*C."""
    dict_size, input_size = W.shape
    num_layers = Wlin.shape[0]
    assert dict_size == input_size, (
        "AdaptiveLISTA forward only broadcasts correctly when dict_size == input_size"
    )
    s = int(math.isqrt(input_size))

    x = x_nchw.reshape(-1, input_size).astype(jnp.float32)  # x.view(-1, input_size)
    n = x.shape[0]

    W = W.astype(jnp.float32)
    Wlin = Wlin.astype(jnp.float32)
    blin = blin.astype(jnp.float32)
    bT = b.reshape(1, dict_size).astype(jnp.float32)          # b.t()

    # --- x-independent precompute in plain XLA (tiny dict x dict matmuls) ---
    alpha = lax.rsqrt(jnp.sum(W * W))                          # 1 / ||W||_F
    P = jnp.eye(dict_size, dtype=jnp.float32) - alpha * (W.T @ W)
    # M_i = Wlin_i^T @ P   (M_i[a,k] = sum_b Wlin_i[b,a] P[b,k])
    M = jnp.einsum("lba,bk->lak", Wlin, P)                     # (L, D, D)
    c = (blin @ P).reshape(num_layers, 1, dict_size)           # (L, 1, D)
    alpha_arr = alpha.reshape(1, 1)                            # scalar -> SMEM

    tile_n = _pick_tile_n(n)
    grid = (n // tile_n,)
    D = dict_size

    out = pl.pallas_call(
        partial(_lista_kernel, num_layers),
        out_shape=jax.ShapeDtypeStruct((n, input_size), jnp.float32),
        grid=grid,
        in_specs=[
            pl.BlockSpec(memory_space=pltpu.MemorySpace.SMEM),           # alpha scalar
            pl.BlockSpec((tile_n, input_size), lambda i: (i, 0)),        # x (tiled over N)
            pl.BlockSpec((D, input_size), lambda i: (0, 0)),             # W
            pl.BlockSpec((num_layers, D, D), lambda i: (0, 0, 0)),       # fused M
            pl.BlockSpec((num_layers, 1, D), lambda i: (0, 0, 0)),       # fused c
            pl.BlockSpec((1, D), lambda i: (0, 0)),                      # b^T
        ],
        out_specs=pl.BlockSpec((tile_n, input_size), lambda i: (i, 0)),
        compiler_params=pltpu.CompilerParams(dimension_semantics=("parallel",)),
    )(alpha_arr, x, W, M, c, bT)

    return out.reshape(-1, 1, s, s)


if __name__ == "__main__":
    B, C, H, Wd = 2, 4, 16, 16
    input_size = H * Wd          # 256  (x.view(-1, input_size) -> N = B*C = 8 rows)
    dict_size = input_size       # module requires dict_size == input_size
    num_layers = 3
    s = int(math.isqrt(input_size))

    key = jax.random.PRNGKey(0)
    keys = jax.random.split(key, 2 + 2 * num_layers)

    # W: kaiming_uniform_(a=sqrt(5)) on (dict, input) -> U(-1/sqrt(fan_in), 1/sqrt(fan_in))
    bound_W = 1.0 / math.sqrt(input_size)
    W = jax.random.uniform(keys[0], (dict_size, input_size), jnp.float32, -bound_W, bound_W)
    b = jnp.zeros((dict_size, 1), jnp.float32)   # nn.init.zeros_

    # nn.Linear(dict, dict): weight & bias ~ U(-1/sqrt(dict), 1/sqrt(dict))
    bound_L = 1.0 / math.sqrt(dict_size)
    Wlin = jnp.stack([
        jax.random.uniform(keys[2 + 2 * i], (dict_size, dict_size), jnp.float32, -bound_L, bound_L)
        for i in range(num_layers)
    ])
    blin = jnp.stack([
        jax.random.uniform(keys[3 + 2 * i], (dict_size,), jnp.float32, -bound_L, bound_L)
        for i in range(num_layers)
    ])

    x = jax.random.normal(keys[1], (B, C, H, Wd), jnp.float32)   # NCHW input

    out = adaptive_lista_forward(x, W, Wlin, blin, b)
    jax.block_until_ready(out)

    # pure-JAX reference following the PyTorch forward exactly
    xf = x.reshape(-1, input_size)
    alpha = 1.0 / jnp.linalg.norm(W)
    z = jnp.zeros((xf.shape[0], dict_size), jnp.float32)
    for i in range(num_layers):
        z = z @ Wlin[i].T + blin[i]
        z = z + (xf - z @ W.T) @ W * alpha
        z = jnp.maximum(z, 0.0)
    ref = (z @ W + b.T).reshape(-1, 1, s, s)

    assert out.shape == (B * C, 1, s, s)
    assert jnp.allclose(out, ref, rtol=2e-3, atol=2e-3), "kernel/reference mismatch"
    print("KERNEL_OK")
</pallas_src>

<mosaic_0001>
module attributes {stable_mosaic.version = 11 : i64} {
  func.func @_lista_kernel(%arg0: i32, %arg1: memref<1x1xf32, #tpu.memory_space<smem>>, %arg2: memref<8x256xf32, #tpu.memory_space<vmem>>, %arg3: memref<256x256xf32, #tpu.memory_space<vmem>>, %arg4: memref<3x256x256xf32, #tpu.memory_space<vmem>>, %arg5: memref<3x1x256xf32, #tpu.memory_space<vmem>>, %arg6: memref<1x256xf32, #tpu.memory_space<vmem>>, %arg7: memref<8x256xf32, #tpu.memory_space<vmem>>) attributes {dimension_semantics = [#tpu.dimension_semantics<parallel>], iteration_bounds = array<i64: 1>, scalar_prefetch = 0 : i64, scratch_operands = 0 : i64, tpu.core_type = #tpu.core_type<tc>, window_params = [{transform_indices = @transform_0, window_bounds = array<i64: 1, 1>}, {transform_indices = @transform_1, window_bounds = array<i64: 8, 256>}, {pipeline_mode = #tpu.pipeline_mode<synchronous>, transform_indices = @transform_2, window_bounds = array<i64: 256, 256>}, {pipeline_mode = #tpu.pipeline_mode<synchronous>, transform_indices = @transform_3, window_bounds = array<i64: 3, 256, 256>}, {pipeline_mode = #tpu.pipeline_mode<synchronous>, transform_indices = @transform_4, window_bounds = array<i64: 3, 1, 256>}, {pipeline_mode = #tpu.pipeline_mode<synchronous>, transform_indices = @transform_5, window_bounds = array<i64: 1, 256>}, {transform_indices = @transform_6, window_bounds = array<i64: 8, 256>}]} {
    %c0 = arith.constant 0 : index
    %c0_0 = arith.constant 0 : index
    %0 = vector.load %arg2[%c0, %c0_0] : memref<8x256xf32, #tpu.memory_space<vmem>>, vector<8x256xf32>
    %c0_1 = arith.constant 0 : index
    %c0_2 = arith.constant 0 : index
    %1 = vector.load %arg3[%c0_1, %c0_2] : memref<256x256xf32, #tpu.memory_space<vmem>>, vector<256x256xf32>
    %c0_3 = arith.constant 0 : index
    %c0_4 = arith.constant 0 : index
    %2 = memref.load %arg1[%c0_3, %c0_4] : memref<1x1xf32, #tpu.memory_space<smem>>
    %cst = arith.constant dense<0.000000e+00> : vector<8x256xf32>
    %3 = tpu.matmul %0, %1, %cst {dimension_numbers = #tpu.dot_dimension_numbers<[1], [0], [0], [1], [0, 0, 1, 1], [], []>} : vector<8x256xf32>, vector<256x256xf32>, vector<8x256xf32> -> vector<8x256xf32>
    %4 = vector.broadcast %2 : f32 to vector<8x256xf32>
    %5 = arith.mulf %3, %4 : vector<8x256xf32>
    %c0_5 = arith.constant 0 : index
    %c0_6 = arith.constant 0 : index
    %c0_7 = arith.constant 0 : index
    %6 = vector.load %arg5[%c0_5, %c0_6, %c0_7] : memref<3x1x256xf32, #tpu.memory_space<vmem>>, vector<1x1x256xf32>
    %7 = vector.shape_cast %6 : vector<1x1x256xf32> to vector<1x256xf32>
    %8 = vector.broadcast %7 : vector<1x256xf32> to vector<8x256xf32>
    %9 = arith.addf %8, %5 : vector<8x256xf32>
    %cst_8 = arith.constant 0.000000e+00 : f32
    %10 = vector.broadcast %cst_8 : f32 to vector<8x256xf32>
    %11 = arith.maximumf %9, %10 : vector<8x256xf32>
    %c1 = arith.constant 1 : index
    %c0_9 = arith.constant 0 : index
    %c0_10 = arith.constant 0 : index
    %12 = vector.load %arg4[%c1, %c0_9, %c0_10] : memref<3x256x256xf32, #tpu.memory_space<vmem>>, vector<1x256x256xf32>
    %13 = vector.shape_cast %12 : vector<1x256x256xf32> to vector<256x256xf32>
    %cst_11 = arith.constant dense<0.000000e+00> : vector<8x256xf32>
    %14 = tpu.matmul %11, %13, %cst_11 {dimension_numbers = #tpu.dot_dimension_numbers<[1], [0], [0], [1], [0, 0, 1, 1], [], []>} : vector<8x256xf32>, vector<256x256xf32>, vector<8x256xf32> -> vector<8x256xf32>
    %c1_12 = arith.constant 1 : index
    %c0_13 = arith.constant 0 : index
    %c0_14 = arith.constant 0 : index
    %15 = vector.load %arg5[%c1_12, %c0_13, %c0_14] : memref<3x1x256xf32, #tpu.memory_space<vmem>>, vector<1x1x256xf32>
    %16 = vector.shape_cast %15 : vector<1x1x256xf32> to vector<1x256xf32>
    %17 = vector.broadcast %16 : vector<1x256xf32> to vector<8x256xf32>
    %18 = arith.addf %14, %17 : vector<8x256xf32>
    %19 = arith.addf %18, %5 : vector<8x256xf32>
    %cst_15 = arith.constant 0.000000e+00 : f32
    %20 = vector.broadcast %cst_15 : f32 to vector<8x256xf32>
    %21 = arith.maximumf %19, %20 : vector<8x256xf32>
    %c2 = arith.constant 2 : index
    %c0_16 = arith.constant 0 : index
    %c0_17 = arith.constant 0 : index
    %22 = vector.load %arg4[%c2, %c0_16, %c0_17] : memref<3x256x256xf32, #tpu.memory_space<vmem>>, vector<1x256x256xf32>
    %23 = vector.shape_cast %22 : vector<1x256x256xf32> to vector<256x256xf32>
    %cst_18 = arith.constant dense<0.000000e+00> : vector<8x256xf32>
    %24 = tpu.matmul %21, %23, %cst_18 {dimension_numbers = #tpu.dot_dimension_numbers<[1], [0], [0], [1], [0, 0, 1, 1], [], []>} : vector<8x256xf32>, vector<256x256xf32>, vector<8x256xf32> -> vector<8x256xf32>
    %c2_19 = arith.constant 2 : index
    %c0_20 = arith.constant 0 : index
    %c0_21 = arith.constant 0 : index
    %25 = vector.load %arg5[%c2_19, %c0_20, %c0_21] : memref<3x1x256xf32, #tpu.memory_space<vmem>>, vector<1x1x256xf32>
    %26 = vector.shape_cast %25 : vector<1x1x256xf32> to vector<1x256xf32>
    %27 = vector.broadcast %26 : vector<1x256xf32> to vector<8x256xf32>
    %28 = arith.addf %24, %27 : vector<8x256xf32>
    %29 = arith.addf %28, %5 : vector<8x256xf32>
    %cst_22 = arith.constant 0.000000e+00 : f32
    %30 = vector.broadcast %cst_22 : f32 to vector<8x256xf32>
    %31 = arith.maximumf %29, %30 : vector<8x256xf32>
    %cst_23 = arith.constant dense<0.000000e+00> : vector<8x256xf32>
    %32 = tpu.matmul %31, %1, %cst_23 {dimension_numbers = #tpu.dot_dimension_numbers<[1], [0], [0], [1], [0, 0, 1, 1], [], []>} : vector<8x256xf32>, vector<256x256xf32>, vector<8x256xf32> -> vector<8x256xf32>
    %c0_24 = arith.constant 0 : index
    %c0_25 = arith.constant 0 : index
    %33 = vector.load %arg6[%c0_24, %c0_25] : memref<1x256xf32, #tpu.memory_space<vmem>>, vector<1x256xf32>
    %34 = vector.broadcast %33 : vector<1x256xf32> to vector<8x256xf32>
    %35 = arith.addf %32, %34 : vector<8x256xf32>
    %c0_26 = arith.constant 0 : index
    %c0_27 = arith.constant 0 : index
    %36 = vector.load %arg7[%c0_26, %c0_27] : memref<8x256xf32, #tpu.memory_space<vmem>>, vector<8x256xf32>
    tpu.vector_store %arg7[%c0_26, %c0_27], %35 {strides = array<i32>} : memref<8x256xf32, #tpu.memory_space<vmem>>, vector<8x256xf32>,
    return
  }
  func.func @transform_0(%arg0: i32) -> (i32, i32) {
    %c0_i32 = arith.constant 0 : i32
    %c0_i32_0 = arith.constant 0 : i32
    %c0_i32_1 = arith.constant 0 : i32
    return %c0_i32, %c0_i32_0 : i32, i32
  }
  func.func @transform_1(%arg0: i32) -> (i32, i32) {
    %c0_i32 = arith.constant 0 : i32
    %c0_i32_0 = arith.constant 0 : i32
    return %arg0, %c0_i32 : i32, i32
  }
  func.func @transform_2(%arg0: i32) -> (i32, i32) {
    %c0_i32 = arith.constant 0 : i32
    %c0_i32_0 = arith.constant 0 : i32
    %c0_i32_1 = arith.constant 0 : i32
    return %c0_i32, %c0_i32_0 : i32, i32
  }
  func.func @transform_3(%arg0: i32) -> (i32, i32, i32) {
    %c0_i32 = arith.constant 0 : i32
    %c0_i32_0 = arith.constant 0 : i32
    %c0_i32_1 = arith.constant 0 : i32
    %c0_i32_2 = arith.constant 0 : i32
    return %c0_i32, %c0_i32_0, %c0_i32_1 : i32, i32, i32
  }
  func.func @transform_4(%arg0: i32) -> (i32, i32, i32) {
    %c0_i32 = arith.constant 0 : i32
    %c0_i32_0 = arith.constant 0 : i32
    %c0_i32_1 = arith.constant 0 : i32
    %c0_i32_2 = arith.constant 0 : i32
    return %c0_i32, %c0_i32_0, %c0_i32_1 : i32, i32, i32
  }
  func.func @transform_5(%arg0: i32) -> (i32, i32) {
    %c0_i32 = arith.constant 0 : i32
    %c0_i32_0 = arith.constant 0 : i32
    %c0_i32_1 = arith.constant 0 : i32
    return %c0_i32, %c0_i32_0 : i32, i32
  }
  func.func @transform_6(%arg0: i32) -> (i32, i32) {
    %c0_i32 = arith.constant 0 : i32
    %c0_i32_0 = arith.constant 0 : i32
    return %arg0, %c0_i32 : i32, i32
  }
}

</mosaic_0001>

<llo_original>
// kernel: tpu_custom_call.1
$region0: #{tpu_custom_call.1}
  #allocation0 [shape = 'u32[]', space=smem, size = 0x4, offset = 0x4, fixed_abs, tag = 'smem constant byte address 0x4 - core index']
  #allocation1 [shape = 'u32[72,128]{1,0:T(1,128)}', space=vmem, size = 0x9000, scoped, tag = 'internal scratch']
  #allocation2 [shape = 'f32[1,1]{1,0:T(1,128)S(6)}', space=smem, size = 0x200, scoped, tag = 'scoped memory for tpu_custom_call.1']
  %s0 = inlined_call_operand.<no memory space> [shape: f32[1,1], index: 0, kind: input, shape index: {}]
  %s1 = inlined_call_operand.hbm [shape: f32[8,256], index: 1, kind: input, shape index: {}]
  %s2 = inlined_call_operand.hbm [shape: f32[256,256], index: 2, kind: input, shape index: {}]
  %s3 = inlined_call_operand.hbm [shape: f32[3,256,256], index: 3, kind: input, shape index: {}]
  %s4 = inlined_call_operand.hbm [shape: f32[3,1,256], index: 4, kind: input, shape index: {}]
  %s5 = inlined_call_operand.vmem [shape: f32[1,256], index: 5, kind: input, shape index: {}]
  %s6 = inlined_call_operand.hbm [shape: f32[8,256], index: 6, kind: output, shape index: {}]
  %s7 = sld [smem:[#allocation0]]
  $region50: #{tpu_custom_call.1} parent=0
    _
  %s9 = ssub.s32 1, %s7
  %s10 = scalar_select 0, %s9, %s7
  %11 = sst [smem:[#allocation2]] %s0
  $region1: #{tpu_custom_call.1} parent=0
    #allocation3 [shape = 'u8[8192]{0}', space=vmem, size = 0x2000, scoped, tag = 'input window, operand 1, single buffered']
    #allocation4 [shape = 's32[1]{0}', space=sflag, size = 0x4, scoped, tag = 'scoped memory for tpu_custom_call.1']
    #allocation5 [shape = 's32[1]{0}', space=sflag, size = 0x4, scoped, tag = 'scoped memory for tpu_custom_call.1']
    #allocation6 [shape = 'u8[262144]{0}', space=vmem, size = 0x40000, scoped, tag = 'input window, operand 2, single buffered']
    #allocation7 [shape = 's32[1]{0}', space=sflag, size = 0x4, scoped, tag = 'scoped memory for tpu_custom_call.1']
    #allocation8 [shape = 'u8[786432]{0}', space=vmem, size = 0xc0000, scoped, tag = 'input window, operand 3, single buffered']
    #allocation9 [shape = 'u8[3072]{0}', space=vmem, size = 0xc00, scoped, tag = 'input window, operand 4, single buffered']
    #allocation10 [shape = 's32[1]{0}', space=sflag, size = 0x4, scoped, tag = 'scoped memory for tpu_custom_call.1']
    #allocation11 [shape = 'u8[8192]{0}', space=vmem, size = 0x2000, scoped, tag = 'output window, operand 0, single buffered']
    %12 = vsyncpa [#allocation4], 0
    %13 = vsyncpa [#allocation7], 0
    %14 = vsyncpa [#allocation10], 0
    %15 = vsyncpa [#allocation5], 0
    // Predicated region
    $region2: #{tpu_custom_call.1} parent=1 // pred_check
      _
    $region3: #{tpu_custom_call.1} parent=1 // pred_check_branch
      %17 = sbr.rel (0) target = $region5
    $region4: #{tpu_custom_call.1} parent=1 // pred_region
      _
    $region5: #{tpu_custom_call.1} parent=1 // pred_fallthru
      _
    // Predicated region
    $region6: #{tpu_custom_call.1} parent=1 // pred_check
      _
    $region7: #{tpu_custom_call.1} parent=1 // pred_check_branch
      %19 = sbr.rel (0) target = $region9
    $region8: #{tpu_custom_call.1} parent=1 // pred_region
      %21 = vsyncadd [#allocation4], 0
      %s23 = sshll.u32 %s1, 4
      %s24 = int_to_ptr.hbm [resolvable:$true] %s23
      %s25 = sshll.u32 [#allocation3], 4
      %s26 = int_to_ptr.vmem [resolvable:$true] %s25
      %28 = dma.hbm_to_vmem [thread:$0]  %s24, 256, %s26, [#allocation4]
    $region9: #{tpu_custom_call.1} parent=1 // pred_fallthru
      _
    // Predicated region
    $region10: #{tpu_custom_call.1} parent=1 // pred_check
      _
    $region11: #{tpu_custom_call.1} parent=1 // pred_check_branch
      %30 = sbr.rel (0) target = $region13
    $region12: #{tpu_custom_call.1} parent=1 // pred_region
      %32 = vsyncadd [#allocation7], 0
      %s33 = sshll.u32 %s2, 4
      %s34 = int_to_ptr.hbm [resolvable:$true] %s33
      %s35 = sshll.u32 [#allocation6], 4
      %s36 = int_to_ptr.vmem [resolvable:$true] %s35
      %41 = dma.hbm_to_vmem [thread:$0]  %s34, 8192, %s36, [#allocation7], 256, 256, 16
    $region13: #{tpu_custom_call.1} parent=1 // pred_fallthru
      _
    // Predicated region
    $region14: #{tpu_custom_call.1} parent=1 // pred_check
      _
    $region15: #{tpu_custom_call.1} parent=1 // pred_check_branch
      %43 = sbr.rel (0) target = $region17
    $region16: #{tpu_custom_call.1} parent=1 // pred_region
      %45 = vsyncadd [#allocation7], 0
      %s46 = sshll.u32 %s3, 4
      %s47 = int_to_ptr.hbm [resolvable:$true] %s46
      %s48 = sshll.u32 [#allocation8], 4
      %s49 = int_to_ptr.vmem [resolvable:$true] %s48
      %54 = dma.hbm_to_vmem [thread:$0]  %s47, 24576, %s49, [#allocation7], 256, 256, 16
    $region17: #{tpu_custom_call.1} parent=1 // pred_fallthru
      _
    // Predicated region
    $region18: #{tpu_custom_call.1} parent=1 // pred_check
      _
    $region19: #{tpu_custom_call.1} parent=1 // pred_check_branch
      %56 = sbr.rel (0) target = $region21
    $region20: #{tpu_custom_call.1} parent=1 // pred_region
      %58 = vsyncadd [#allocation10], 0
      %s59 = sshll.u32 %s4, 4
      %s60 = int_to_ptr.hbm [resolvable:$true] %s59
      %s61 = sshll.u32 [#allocation9], 4
      %s62 = int_to_ptr.vmem [resolvable:$true] %s61
      %67 = dma.hbm_to_vmem [thread:$0]  %s60, 96, %s62, [#allocation10], 32, 32, 2
    $region21: #{tpu_custom_call.1} parent=1 // pred_fallthru
      _
    // Predicated region
    $region22: #{tpu_custom_call.1} parent=1 // pred_check
      _
    $region23: #{tpu_custom_call.1} parent=1 // pred_check_branch
      %69 = sbr.rel (0) target = $region25
    $region24: #{tpu_custom_call.1} parent=1 // pred_region
      _
    $region25: #{tpu_custom_call.1} parent=1 // pred_fallthru
      _
    // Predicated region
    $region26: #{tpu_custom_call.1} parent=1 // pred_check
      _
    $region27: #{tpu_custom_call.1} parent=1 // pred_check_branch
      %71 = sbr.rel (0) target = $region29
    $region28: #{tpu_custom_call.1} parent=1 // pred_region
      %73 = dma.done [#allocation4], 256
    $region29: #{tpu_custom_call.1} parent=1 // pred_fallthru
      _
    // Predicated region
    $region30: #{tpu_custom_call.1} parent=1 // pred_check
      _
    $region31: #{tpu_custom_call.1} parent=1 // pred_check_branch
      %75 = sbr.rel (0) target = $region33
    $region32: #{tpu_custom_call.1} parent=1 // pred_region
      %77 = dma.done [#allocation7], 8192
    $region33: #{tpu_custom_call.1} parent=1 // pred_fallthru
      _
    // Predicated region
    $region34: #{tpu_custom_call.1} parent=1 // pred_check
      _
    $region35: #{tpu_custom_call.1} parent=1 // pred_check_branch
      %79 = sbr.rel (0) target = $region37
    $region36: #{tpu_custom_call.1} parent=1 // pred_region
      %81 = dma.done [#allocation7], 24576
    $region37: #{tpu_custom_call.1} parent=1 // pred_fallthru
      _
    // Predicated region
    $region38: #{tpu_custom_call.1} parent=1 // pred_check
      _
    $region39: #{tpu_custom_call.1} parent=1 // pred_check_branch
      %83 = sbr.rel (0) target = $region41
    $region40: #{tpu_custom_call.1} parent=1 // pred_region
      %85 = dma.done [#allocation10], 96
    $region41: #{tpu_custom_call.1} parent=1 // pred_fallthru
      _
    %v86 = vld [vmem:[#allocation3] sm:$0xff]
    %v87 = vld [vmem:[#allocation3 + $0x8] sm:$0xff]
    %v88 = vld [vmem:[#allocation6] sm:$0xff]
    %v89 = vld [vmem:[#allocation6 + $0x8] sm:$0xff]
    %v90 = vld [vmem:[#allocation6 + $0x10] sm:$0xff]
    %v91 = vld [vmem:[#allocation6 + $0x18] sm:$0xff]
    %v92 = vld [vmem:[#allocation6 + $0x20] sm:$0xff]
    %v93 = vld [vmem:[#allocation6 + $0x28] sm:$0xff]
    %v94 = vld [vmem:[#allocation6 + $0x30] sm:$0xff]
    %v95 = vld [vmem:[#allocation6 + $0x38] sm:$0xff]
    %v96 = vld [vmem:[#allocation6 + $0x40] sm:$0xff]
    %v97 = vld [vmem:[#allocation6 + $0x48] sm:$0xff]
    %v98 = vld [vmem:[#allocation6 + $0x50] sm:$0xff]
    %v99 = vld [vmem:[#allocation6 + $0x58] sm:$0xff]
    %v100 = vld [vmem:[#allocation6 + $0x60] sm:$0xff]
    %v101 = vld [vmem:[#allocation6 + $0x68] sm:$0xff]
    %v102 = vld [vmem:[#allocation6 + $0x70] sm:$0xff]
    %v103 = vld [vmem:[#allocation6 + $0x78] sm:$0xff]
    %v104 = vld [vmem:[#allocation6 + $0x80] sm:$0xff]
    %v105 = vld [vmem:[#allocation6 + $0x88] sm:$0xff]
    %v106 = vld [vmem:[#allocation6 + $0x90] sm:$0xff]
    %v107 = vld [vmem:[#allocation6 + $0x98] sm:$0xff]
    %v108 = vld [vmem:[#allocation6 + $0xa0] sm:$0xff]
    %v109 = vld [vmem:[#allocation6 + $0xa8] sm:$0xff]
    %v110 = vld [vmem:[#allocation6 + $0xb0] sm:$0xff]
    %v111 = vld [vmem:[#allocation6 + $0xb8] sm:$0xff]
    %v112 = vld [vmem:[#allocation6 + $0xc0] sm:$0xff]
    %v113 = vld [vmem:[#allocation6 + $0xc8] sm:$0xff]
    %v114 = vld [vmem:[#allocation6 + $0xd0] sm:$0xff]
    %v115 = vld [vmem:[#allocation6 + $0xd8] sm:$0xff]
    %v116 = vld [vmem:[#allocation6 + $0xe0] sm:$0xff]
    %v117 = vld [vmem:[#allocation6 + $0xe8] sm:$0xff]
    %v118 = vld [vmem:[#allocation6 + $0xf0] sm:$0xff]
    %v119 = vld [vmem:[#allocation6 + $0xf8] sm:$0xff]
    %v120 = vld [vmem:[#allocation6 + $0x100] sm:$0xff]
    %v121 = vld [vmem:[#allocation6 + $0x108] sm:$0xff]
    %v122 = vld [vmem:[#allocation6 + $0x110] sm:$0xff]
    %v123 = vld [vmem:[#allocation6 + $0x118] sm:$0xff]
    %v124 = vld [vmem:[#allocation6 + $0x120] sm:$0xff]
    %v125 = vld [vmem:[#allocation6 + $0x128] sm:$0xff]
    %v126 = vld [vmem:[#allocation6 + $0x130] sm:$0xff]
    %v127 = vld [vmem:[#allocation6 + $0x138] sm:$0xff]
    %v128 = vld [vmem:[#allocation6 + $0x140] sm:$0xff]
    %v129 = vld [vmem:[#allocation6 + $0x148] sm:$0xff]
    %v130 = vld [vmem:[#allocation6 + $0x150] sm:$0xff]
    %v131 = vld [vmem:[#allocation6 + $0x158] sm:$0xff]
    %v132 = vld [vmem:[#allocation6 + $0x160] sm:$0xff]
    %v133 = vld [vmem:[#allocation6 + $0x168] sm:$0xff]
    %v134 = vld [vmem:[#allocation6 + $0x170] sm:$0xff]
    %v135 = vld [vmem:[#allocation6 + $0x178] sm:$0xff]
    %v136 = vld [vmem:[#allocation6 + $0x180] sm:$0xff]
    %v137 = vld [vmem:[#allocation6 + $0x188] sm:$0xff]
    %v138 = vld [vmem:[#allocation6 + $0x190] sm:$0xff]
    %v139 = vld [vmem:[#allocation6 + $0x198] sm:$0xff]
    %v140 = vld [vmem:[#allocation6 + $0x1a0] sm:$0xff]
    %v141 = vld [vmem:[#allocation6 + $0x1a8] sm:$0xff]
    %v142 = vld [vmem:[#allocation6 + $0x1b0] sm:$0xff]
    %v143 = vld [vmem:[#allocation6 + $0x1b8] sm:$0xff]
    %v144 = vld [vmem:[#allocation6 + $0x1c0] sm:$0xff]
    %v145 = vld [vmem:[#allocation6 + $0x1c8] sm:$0xff]
    %v146 = vld [vmem:[#allocation6 + $0x1d0] sm:$0xff]
    %v147 = vld [vmem:[#allocation6 + $0x1d8] sm:$0xff]
    %v148 = vld [vmem:[#allocation6 + $0x1e0] sm:$0xff]
    %v149 = vld [vmem:[#allocation6 + $0x1e8] sm:$0xff]
    %v150 = vld [vmem:[#allocation6 + $0x1f0] sm:$0xff]
    %v151 = vld [vmem:[#allocation6 + $0x1f8] sm:$0xff]
    %s152 = sld [smem:[#allocation2]]
    %153 = vmatpush.msra.mxu0 %v118
    %154 = vmatpush.msra.mxu0 %v116
    %155 = vmatpush.msra.mxu0 %v114
    %156 = vmatpush.msra.mxu0 %v112
    %157 = vmatpush.msra.mxu0 %v110
    %158 = vmatpush.msra.mxu0 %v108
    %159 = vmatpush.msra.mxu0 %v106
    %160 = vmatpush.msra.mxu0 %v104
    %161 = vmatpush.msra.mxu0 %v102
    %162 = vmatpush.msra.mxu0 %v100
    %163 = vmatpush.msra.mxu0 %v98
    %164 = vmatpush.msra.mxu0 %v96
    %165 = vmatpush.msra.mxu0 %v94
    %166 = vmatpush.msra.mxu0 %v92
    %167 = vmatpush.msra.mxu0 %v90
    %168 = vmatpush.msra.mxu0 %v88
    %169 = vmatmul.f32.gmra.mxu0 %v86
    %v170 = vpop.f32.mrf.mxu0
    %v171 = vadd.f32 0.0, %v170
    %172 = vdwg.mxu0
    %173 = vmatpush.msra.mxu0 %v150
    %174 = vmatpush.msra.mxu0 %v148
    %175 = vmatpush.msra.mxu0 %v146
    %176 = vmatpush.msra.mxu0 %v144
    %177 = vmatpush.msra.mxu0 %v142
    %178 = vmatpush.msra.mxu0 %v140
    %179 = vmatpush.msra.mxu0 %v138
    %180 = vmatpush.msra.mxu0 %v136
    %181 = vmatpush.msra.mxu0 %v134
    %182 = vmatpush.msra.mxu0 %v132
    %183 = vmatpush.msra.mxu0 %v130
    %184 = vmatpush.msra.mxu0 %v128
    %185 = vmatpush.msra.mxu0 %v126
    %186 = vmatpush.msra.mxu0 %v124
    %187 = vmatpush.msra.mxu0 %v122
    %188 = vmatpush.msra.mxu0 %v120
    %189 = vmatmul.f32.gmra.mxu0 %v87
    %v190 = vpop.f32.mrf.mxu0
    %v191 = vadd.f32 %v171, %v190
    %192 = vdwg.mxu0
    %193 = vmatpush.msra.mxu0 %v119
    %194 = vmatpush.msra.mxu0 %v117
    %195 = vmatpush.msra.mxu0 %v115
    %196 = vmatpush.msra.mxu0 %v113
    %197 = vmatpush.msra.mxu0 %v111
    %198 = vmatpush.msra.mxu0 %v109
    %199 = vmatpush.msra.mxu0 %v107
    %200 = vmatpush.msra.mxu0 %v105
    %201 = vmatpush.msra.mxu0 %v103
    %202 = vmatpush.msra.mxu0 %v101
    %203 = vmatpush.msra.mxu0 %v99
    %204 = vmatpush.msra.mxu0 %v97
    %205 = vmatpush.msra.mxu0 %v95
    %206 = vmatpush.msra.mxu0 %v93
    %207 = vmatpush.msra.mxu0 %v91
    %208 = vmatpush.msra.mxu0 %v89
    %209 = vmatmul.f32.gmra.mxu0 %v86
    %v210 = vpop.f32.mrf.mxu0
    %v211 = vadd.f32 0.0, %v210
    %212 = vdwg.mxu0
    %213 = vmatpush.msra.mxu0 %v151
    %214 = vmatpush.msra.mxu0 %v149
    %215 = vmatpush.msra.mxu0 %v147
    %216 = vmatpush.msra.mxu0 %v145
    %217 = vmatpush.msra.mxu0 %v143
    %218 = vmatpush.msra.mxu0 %v141
    %219 = vmatpush.msra.mxu0 %v139
    %220 = vmatpush.msra.mxu0 %v137
    %221 = vmatpush.msra.mxu0 %v135
    %222 = vmatpush.msra.mxu0 %v133
    %223 = vmatpush.msra.mxu0 %v131
    %224 = vmatpush.msra.mxu0 %v129
    %225 = vmatpush.msra.mxu0 %v127
    %226 = vmatpush.msra.mxu0 %v125
    %227 = vmatpush.msra.mxu0 %v123
    %228 = vmatpush.msra.mxu0 %v121
    %229 = vmatmul.f32.gmra.mxu0 %v87
    %v230 = vpop.f32.mrf.mxu0
    %v231 = vadd.f32 %v211, %v230
    %232 = vdwg.mxu0
    %v233 = vstv %s152
    %v234 = vmul.f32 %v191, %v233
    %v235 = vmul.f32 %v231, %v233
    %v236 = vld [vmem:[#allocation9] sm:$0x3]
    %v238 = vperm.slane %v236, 0
    %v239 = vperm.slane %v236, 1
    %v242 = vadd.f32 %v238, %v234
    %v243 = vadd.f32 %v239, %v235
    %v244 = vmax.f32 %v242, 0.0
    %v245 = vmax.f32 %v243, 0.0
    %s246 = scalar_lea.vmem [#allocation8], 512
    %v247 = vld [vmem:[%s246] sm:$0xff]
    %v248 = vld [vmem:[%s246 + $0x8] sm:$0xff]
    %v249 = vld [vmem:[%s246 + $0x10] sm:$0xff]
    %v250 = vld [vmem:[%s246 + $0x18] sm:$0xff]
    %v251 = vld [vmem:[%s246 + $0x20] sm:$0xff]
    %v252 = vld [vmem:[%s246 + $0x28] sm:$0xff]
    %v253 = vld [vmem:[%s246 + $0x30] sm:$0xff]
    %v254 = vld [vmem:[%s246 + $0x38] sm:$0xff]
    %v255 = vld [vmem:[%s246 + $0x40] sm:$0xff]
    %v256 = vld [vmem:[%s246 + $0x48] sm:$0xff]
    %v257 = vld [vmem:[%s246 + $0x50] sm:$0xff]
    %v258 = vld [vmem:[%s246 + $0x58] sm:$0xff]
    %v259 = vld [vmem:[%s246 + $0x60] sm:$0xff]
    %v260 = vld [vmem:[%s246 + $0x68] sm:$0xff]
    %v261 = vld [vmem:[%s246 + $0x70] sm:$0xff]
    %v262 = vld [vmem:[%s246 + $0x78] sm:$0xff]
    %v263 = vld [vmem:[%s246 + $0x80] sm:$0xff]
    %v264 = vld [vmem:[%s246 + $0x88] sm:$0xff]
    %v265 = vld [vmem:[%s246 + $0x90] sm:$0xff]
    %v266 = vld [vmem:[%s246 + $0x98] sm:$0xff]
    %v267 = vld [vmem:[%s246 + $0xa0] sm:$0xff]
    %v268 = vld [vmem:[%s246 + $0xa8] sm:$0xff]
    %v269 = vld [vmem:[%s246 + $0xb0] sm:$0xff]
    %v270 = vld [vmem:[%s246 + $0xb8] sm:$0xff]
    %v271 = vld [vmem:[%s246 + $0xc0] sm:$0xff]
    %v272 = vld [vmem:[%s246 + $0xc8] sm:$0xff]
    %v273 = vld [vmem:[%s246 + $0xd0] sm:$0xff]
    %v274 = vld [vmem:[%s246 + $0xd8] sm:$0xff]
    %v275 = vld [vmem:[%s246 + $0xe0] sm:$0xff]
    %v276 = vld [vmem:[%s246 + $0xe8] sm:$0xff]
    %v277 = vld [vmem:[%s246 + $0xf0] sm:$0xff]
    %v278 = vld [vmem:[%s246 + $0xf8] sm:$0xff]
    %v279 = vld [vmem:[%s246 + $0x100] sm:$0xff]
    %v280 = vld [vmem:[%s246 + $0x108] sm:$0xff]
    %v281 = vld [vmem:[%s246 + $0x110] sm:$0xff]
    %v282 = vld [vmem:[%s246 + $0x118] sm:$0xff]
    %v283 = vld [vmem:[%s246 + $0x120] sm:$0xff]
    %v284 = vld [vmem:[%s246 + $0x128] sm:$0xff]
    %v285 = vld [vmem:[%s246 + $0x130] sm:$0xff]
    %v286 = vld [vmem:[%s246 + $0x138] sm:$0xff]
    %v287 = vld [vmem:[%s246 + $0x140] sm:$0xff]
    %v288 = vld [vmem:[%s246 + $0x148] sm:$0xff]
    %v289 = vld [vmem:[%s246 + $0x150] sm:$0xff]
    %v290 = vld [vmem:[%s246 + $0x158] sm:$0xff]
    %v291 = vld [vmem:[%s246 + $0x160] sm:$0xff]
    %v292 = vld [vmem:[%s246 + $0x168] sm:$0xff]
    %v293 = vld [vmem:[%s246 + $0x170] sm:$0xff]
    %v294 = vld [vmem:[%s246 + $0x178] sm:$0xff]
    %v295 = vld [vmem:[%s246 + $0x180] sm:$0xff]
    %v296 = vld [vmem:[%s246 + $0x188] sm:$0xff]
    %v297 = vld [vmem:[%s246 + $0x190] sm:$0xff]
    %v298 = vld [vmem:[%s246 + $0x198] sm:$0xff]
    %v299 = vld [vmem:[%s246 + $0x1a0] sm:$0xff]
    %v300 = vld [vmem:[%s246 + $0x1a8] sm:$0xff]
    %v301 = vld [vmem:[%s246 + $0x1b0] sm:$0xff]
    %v302 = vld [vmem:[%s246 + $0x1b8] sm:$0xff]
    %v303 = vld [vmem:[%s246 + $0x1c0] sm:$0xff]
    %v304 = vld [vmem:[%s246 + $0x1c8] sm:$0xff]
    %v305 = vld [vmem:[%s246 + $0x1d0] sm:$0xff]
    %v306 = vld [vmem:[%s246 + $0x1d8] sm:$0xff]
    %v307 = vld [vmem:[%s246 + $0x1e0] sm:$0xff]
    %v308 = vld [vmem:[%s246 + $0x1e8] sm:$0xff]
    %v309 = vld [vmem:[%s246 + $0x1f0] sm:$0xff]
    %v310 = vld [vmem:[%s246 + $0x1f8] sm:$0xff]
    %s311 = scalar_lea.vmem [#allocation9], 2
    %v312 = vld [vmem:[%s311] sm:$0x3]
    %v314 = vperm.slane %v312, 0
    %v315 = vperm.slane %v312, 1
    %318 = vmatpush.msra.mxu0 %v277
    %319 = vmatpush.msra.mxu0 %v275
    %320 = vmatpush.msra.mxu0 %v273
    %321 = vmatpush.msra.mxu0 %v271
    %322 = vmatpush.msra.mxu0 %v269
    %323 = vmatpush.msra.mxu0 %v267
    %324 = vmatpush.msra.mxu0 %v265
    %325 = vmatpush.msra.mxu0 %v263
    %326 = vmatpush.msra.mxu0 %v261
    %327 = vmatpush.msra.mxu0 %v259
    %328 = vmatpush.msra.mxu0 %v257
    %329 = vmatpush.msra.mxu0 %v255
    %330 = vmatpush.msra.mxu0 %v253
    %331 = vmatpush.msra.mxu0 %v251
    %332 = vmatpush.msra.mxu0 %v249
    %333 = vmatpush.msra.mxu0 %v247
    %334 = vmatmul.f32.gmra.mxu0 %v244
    %v335 = vpop.f32.mrf.mxu0
    %v336 = vadd.f32 %v314, %v335
    %337 = vdwg.mxu0
    %338 = vmatpush.msra.mxu0 %v309
    %339 = vmatpush.msra.mxu0 %v307
    %340 = vmatpush.msra.mxu0 %v305
    %341 = vmatpush.msra.mxu0 %v303
    %342 = vmatpush.msra.mxu0 %v301
    %343 = vmatpush.msra.mxu0 %v299
    %344 = vmatpush.msra.mxu0 %v297
    %345 = vmatpush.msra.mxu0 %v295
    %346 = vmatpush.msra.mxu0 %v293
    %347 = vmatpush.msra.mxu0 %v291
    %348 = vmatpush.msra.mxu0 %v289
    %349 = vmatpush.msra.mxu0 %v287
    %350 = vmatpush.msra.mxu0 %v285
    %351 = vmatpush.msra.mxu0 %v283
    %352 = vmatpush.msra.mxu0 %v281
    %353 = vmatpush.msra.mxu0 %v279
    %354 = vmatmul.f32.gmra.mxu0 %v245
    %v355 = vpop.f32.mrf.mxu0
    %v356 = vadd.f32 %v336, %v355
    %357 = vdwg.mxu0
    %358 = vmatpush.msra.mxu0 %v278
    %359 = vmatpush.msra.mxu0 %v276
    %360 = vmatpush.msra.mxu0 %v274
    %361 = vmatpush.msra.mxu0 %v272
    %362 = vmatpush.msra.mxu0 %v270
    %363 = vmatpush.msra.mxu0 %v268
    %364 = vmatpush.msra.mxu0 %v266
    %365 = vmatpush.msra.mxu0 %v264
    %366 = vmatpush.msra.mxu0 %v262
    %367 = vmatpush.msra.mxu0 %v260
    %368 = vmatpush.msra.mxu0 %v258
    %369 = vmatpush.msra.mxu0 %v256
    %370 = vmatpush.msra.mxu0 %v254
    %371 = vmatpush.msra.mxu0 %v252
    %372 = vmatpush.msra.mxu0 %v250
    %373 = vmatpush.msra.mxu0 %v248
    %374 = vmatmul.f32.gmra.mxu0 %v244
    %v375 = vpop.f32.mrf.mxu0
    %v376 = vadd.f32 %v315, %v375
    %377 = vdwg.mxu0
    %378 = vmatpush.msra.mxu0 %v310
    %379 = vmatpush.msra.mxu0 %v308
    %380 = vmatpush.msra.mxu0 %v306
    %381 = vmatpush.msra.mxu0 %v304
    %382 = vmatpush.msra.mxu0 %v302
    %383 = vmatpush.msra.mxu0 %v300
    %384 = vmatpush.msra.mxu0 %v298
    %385 = vmatpush.msra.mxu0 %v296
    %386 = vmatpush.msra.mxu0 %v294
    %387 = vmatpush.msra.mxu0 %v292
    %388 = vmatpush.msra.mxu0 %v290
    %389 = vmatpush.msra.mxu0 %v288
    %390 = vmatpush.msra.mxu0 %v286
    %391 = vmatpush.msra.mxu0 %v284
    %392 = vmatpush.msra.mxu0 %v282
    %393 = vmatpush.msra.mxu0 %v280
    %394 = vmatmul.f32.gmra.mxu0 %v245
    %v395 = vpop.f32.mrf.mxu0
    %v396 = vadd.f32 %v376, %v395
    %397 = vdwg.mxu0
    %v398 = vadd.f32 %v356, %v234
    %v399 = vadd.f32 %v396, %v235
    %v400 = vmax.f32 %v398, 0.0
    %v401 = vmax.f32 %v399, 0.0
    %s402 = scalar_lea.vmem [#allocation8], 1024
    %v403 = vld [vmem:[%s402] sm:$0xff]
    %v404 = vld [vmem:[%s402 + $0x8] sm:$0xff]
    %v405 = vld [vmem:[%s402 + $0x10] sm:$0xff]
    %v406 = vld [vmem:[%s402 + $0x18] sm:$0xff]
    %v407 = vld [vmem:[%s402 + $0x20] sm:$0xff]
    %v408 = vld [vmem:[%s402 + $0x28] sm:$0xff]
    %v409 = vld [vmem:[%s402 + $0x30] sm:$0xff]
    %v410 = vld [vmem:[%s402 + $0x38] sm:$0xff]
    %v411 = vld [vmem:[%s402 + $0x40] sm:$0xff]
    %v412 = vld [vmem:[%s402 + $0x48] sm:$0xff]
    %v413 = vld [vmem:[%s402 + $0x50] sm:$0xff]
    %v414 = vld [vmem:[%s402 + $0x58] sm:$0xff]
    %v415 = vld [vmem:[%s402 + $0x60] sm:$0xff]
    %v416 = vld [vmem:[%s402 + $0x68] sm:$0xff]
    %v417 = vld [vmem:[%s402 + $0x70] sm:$0xff]
    %v418 = vld [vmem:[%s402 + $0x78] sm:$0xff]
    %v419 = vld [vmem:[%s402 + $0x80] sm:$0xff]
    %v420 = vld [vmem:[%s402 + $0x88] sm:$0xff]
    %v421 = vld [vmem:[%s402 + $0x90] sm:$0xff]
    %v422 = vld [vmem:[%s402 + $0x98] sm:$0xff]
    %v423 = vld [vmem:[%s402 + $0xa0] sm:$0xff]
    %v424 = vld [vmem:[%s402 + $0xa8] sm:$0xff]
    %v425 = vld [vmem:[%s402 + $0xb0] sm:$0xff]
    %v426 = vld [vmem:[%s402 + $0xb8] sm:$0xff]
    %v427 = vld [vmem:[%s402 + $0xc0] sm:$0xff]
    %v428 = vld [vmem:[%s402 + $0xc8] sm:$0xff]
    %v429 = vld [vmem:[%s402 + $0xd0] sm:$0xff]
    %v430 = vld [vmem:[%s402 + $0xd8] sm:$0xff]
    %v431 = vld [vmem:[%s402 + $0xe0] sm:$0xff]
    %v432 = vld [vmem:[%s402 + $0xe8] sm:$0xff]
    %v433 = vld [vmem:[%s402 + $0xf0] sm:$0xff]
    %v434 = vld [vmem:[%s402 + $0xf8] sm:$0xff]
    %v435 = vld [vmem:[%s402 + $0x100] sm:$0xff]
    %v436 = vld [vmem:[%s402 + $0x108] sm:$0xff]
    %v437 = vld [vmem:[%s402 + $0x110] sm:$0xff]
    %v438 = vld [vmem:[%s402 + $0x118] sm:$0xff]
    %v439 = vld [vmem:[%s402 + $0x120] sm:$0xff]
    %v440 = vld [vmem:[%s402 + $0x128] sm:$0xff]
    %v441 = vld [vmem:[%s402 + $0x130] sm:$0xff]
    %v442 = vld [vmem:[%s402 + $0x138] sm:$0xff]
    %v443 = vld [vmem:[%s402 + $0x140] sm:$0xff]
    %v444 = vld [vmem:[%s402 + $0x148] sm:$0xff]
    %v445 = vld [vmem:[%s402 + $0x150] sm:$0xff]
    %v446 = vld [vmem:[%s402 + $0x158] sm:$0xff]
    %v447 = vld [vmem:[%s402 + $0x160] sm:$0xff]
    %v448 = vld [vmem:[%s402 + $0x168] sm:$0xff]
    %v449 = vld [vmem:[%s402 + $0x170] sm:$0xff]
    %v450 = vld [vmem:[%s402 + $0x178] sm:$0xff]
    %v451 = vld [vmem:[%s402 + $0x180] sm:$0xff]
    %v452 = vld [vmem:[%s402 + $0x188] sm:$0xff]
    %v453 = vld [vmem:[%s402 + $0x190] sm:$0xff]
    %v454 = vld [vmem:[%s402 + $0x198] sm:$0xff]
    %v455 = vld [vmem:[%s402 + $0x1a0] sm:$0xff]
    %v456 = vld [vmem:[%s402 + $0x1a8] sm:$0xff]
    %v457 = vld [vmem:[%s402 + $0x1b0] sm:$0xff]
    %v458 = vld [vmem:[%s402 + $0x1b8] sm:$0xff]
    %v459 = vld [vmem:[%s402 + $0x1c0] sm:$0xff]
    %v460 = vld [vmem:[%s402 + $0x1c8] sm:$0xff]
    %v461 = vld [vmem:[%s402 + $0x1d0] sm:$0xff]
    %v462 = vld [vmem:[%s402 + $0x1d8] sm:$0xff]
    %v463 = vld [vmem:[%s402 + $0x1e0] sm:$0xff]
    %v464 = vld [vmem:[%s402 + $0x1e8] sm:$0xff]
    %v465 = vld [vmem:[%s402 + $0x1f0] sm:$0xff]
    %v466 = vld [vmem:[%s402 + $0x1f8] sm:$0xff]
    %s467 = scalar_lea.vmem [#allocation9], 4
    %v468 = vld [vmem:[%s467] sm:$0x3]
    %v470 = vperm.slane %v468, 0
    %v471 = vperm.slane %v468, 1
    %474 = vmatpush.msra.mxu0 %v433
    %475 = vmatpush.msra.mxu0 %v431
    %476 = vmatpush.msra.mxu0 %v429
    %477 = vmatpush.msra.mxu0 %v427
    %478 = vmatpush.msra.mxu0 %v425
    %479 = vmatpush.msra.mxu0 %v423
    %480 = vmatpush.msra.mxu0 %v421
    %481 = vmatpush.msra.mxu0 %v419
    %482 = vmatpush.msra.mxu0 %v417
    %483 = vmatpush.msra.mxu0 %v415
    %484 = vmatpush.msra.mxu0 %v413
    %485 = vmatpush.msra.mxu0 %v411
    %486 = vmatpush.msra.mxu0 %v409
    %487 = vmatpush.msra.mxu0 %v407
    %488 = vmatpush.msra.mxu0 %v405
    %489 = vmatpush.msra.mxu0 %v403
    %490 = vmatmul.f32.gmra.mxu0 %v400
    %v491 = vpop.f32.mrf.mxu0
    %v492 = vadd.f32 %v470, %v491
    %493 = vdwg.mxu0
    %494 = vmatpush.msra.mxu0 %v465
    %495 = vmatpush.msra.mxu0 %v463
    %496 = vmatpush.msra.mxu0 %v461
    %497 = vmatpush.msra.mxu0 %v459
    %498 = vmatpush.msra.mxu0 %v457
    %499 = vmatpush.msra.mxu0 %v455
    %500 = vmatpush.msra.mxu0 %v453
    %501 = vmatpush.msra.mxu0 %v451
    %502 = vmatpush.msra.mxu0 %v449
    %503 = vmatpush.msra.mxu0 %v447
    %504 = vmatpush.msra.mxu0 %v445
    %505 = vmatpush.msra.mxu0 %v443
    %506 = vmatpush.msra.mxu0 %v441
    %507 = vmatpush.msra.mxu0 %v439
    %508 = vmatpush.msra.mxu0 %v437
    %509 = vmatpush.msra.mxu0 %v435
    %510 = vmatmul.f32.gmra.mxu0 %v401
    %v511 = vpop.f32.mrf.mxu0
    %v512 = vadd.f32 %v492, %v511
    %513 = vdwg.mxu0
    %514 = vmatpush.msra.mxu0 %v434
    %515 = vmatpush.msra.mxu0 %v432
    %516 = vmatpush.msra.mxu0 %v430
    %517 = vmatpush.msra.mxu0 %v428
    %518 = vmatpush.msra.mxu0 %v426
    %519 = vmatpush.msra.mxu0 %v424
    %520 = vmatpush.msra.mxu0 %v422
    %521 = vmatpush.msra.mxu0 %v420
    %522 = vmatpush.msra.mxu0 %v418
    %523 = vmatpush.msra.mxu0 %v416
    %524 = vmatpush.msra.mxu0 %v414
    %525 = vmatpush.msra.mxu0 %v412
    %526 = vmatpush.msra.mxu0 %v410
    %527 = vmatpush.msra.mxu0 %v408
    %528 = vmatpush.msra.mxu0 %v406
    %529 = vmatpush.msra.mxu0 %v404
    %530 = vmatmul.f32.gmra.mxu0 %v400
    %v531 = vpop.f32.mrf.mxu0
    %v532 = vadd.f32 %v471, %v531
    %533 = vdwg.mxu0
    %534 = vmatpush.msra.mxu0 %v466
    %535 = vmatpush.msra.mxu0 %v464
    %536 = vmatpush.msra.mxu0 %v462
    %537 = vmatpush.msra.mxu0 %v460
    %538 = vmatpush.msra.mxu0 %v458
    %539 = vmatpush.msra.mxu0 %v456
    %540 = vmatpush.msra.mxu0 %v454
    %541 = vmatpush.msra.mxu0 %v452
    %542 = vmatpush.msra.mxu0 %v450
    %543 = vmatpush.msra.mxu0 %v448
    %544 = vmatpush.msra.mxu0 %v446
    %545 = vmatpush.msra.mxu0 %v444
    %546 = vmatpush.msra.mxu0 %v442
    %547 = vmatpush.msra.mxu0 %v440
    %548 = vmatpush.msra.mxu0 %v438
    %549 = vmatpush.msra.mxu0 %v436
    %550 = vmatmul.f32.gmra.mxu0 %v401
    %v551 = vpop.f32.mrf.mxu0
    %v552 = vadd.f32 %v532, %v551
    %553 = vdwg.mxu0
    %v554 = vadd.f32 %v512, %v234
    %v555 = vadd.f32 %v552, %v235
    %v556 = vmax.f32 %v554, 0.0
    %v557 = vmax.f32 %v555, 0.0
    %v558 = vld [vmem:[%s5] sm:$0x3]
    %v560 = vperm.slane %v558, 0
    %v561 = vperm.slane %v558, 1
    %564 = vmatpush.msra.mxu0 %v118
    %565 = vmatpush.msra.mxu0 %v116
    %566 = vmatpush.msra.mxu0 %v114
    %567 = vmatpush.msra.mxu0 %v112
    %568 = vmatpush.msra.mxu0 %v110
    %569 = vmatpush.msra.mxu0 %v108
    %570 = vmatpush.msra.mxu0 %v106
    %571 = vmatpush.msra.mxu0 %v104
    %572 = vmatpush.msra.mxu0 %v102
    %573 = vmatpush.msra.mxu0 %v100
    %574 = vmatpush.msra.mxu0 %v98
    %575 = vmatpush.msra.mxu0 %v96
    %576 = vmatpush.msra.mxu0 %v94
    %577 = vmatpush.msra.mxu0 %v92
    %578 = vmatpush.msra.mxu0 %v90
    %579 = vmatpush.msra.mxu0 %v88
    %580 = vmatmul.f32.gmra.mxu0 %v556
    %v581 = vpop.f32.mrf.mxu0
    %v582 = vadd.f32 %v560, %v581
    %583 = vdwg.mxu0
    %584 = vmatpush.msra.mxu0 %v150
    %585 = vmatpush.msra.mxu0 %v148
    %586 = vmatpush.msra.mxu0 %v146
    %587 = vmatpush.msra.mxu0 %v144
    %588 = vmatpush.msra.mxu0 %v142
    %589 = vmatpush.msra.mxu0 %v140
    %590 = vmatpush.msra.mxu0 %v138
    %591 = vmatpush.msra.mxu0 %v136
    %592 = vmatpush.msra.mxu0 %v134
    %593 = vmatpush.msra.mxu0 %v132
    %594 = vmatpush.msra.mxu0 %v130
    %595 = vmatpush.msra.mxu0 %v128
    %596 = vmatpush.msra.mxu0 %v126
    %597 = vmatpush.msra.mxu0 %v124
    %598 = vmatpush.msra.mxu0 %v122
    %599 = vmatpush.msra.mxu0 %v120
    %600 = vmatmul.f32.gmra.mxu0 %v557
    %v601 = vpop.f32.mrf.mxu0
    %v602 = vadd.f32 %v582, %v601
    %603 = vdwg.mxu0
    %604 = vmatpush.msra.mxu0 %v119
    %605 = vmatpush.msra.mxu0 %v117
    %606 = vmatpush.msra.mxu0 %v115
    %607 = vmatpush.msra.mxu0 %v113
    %608 = vmatpush.msra.mxu0 %v111
    %609 = vmatpush.msra.mxu0 %v109
    %610 = vmatpush.msra.mxu0 %v107
    %611 = vmatpush.msra.mxu0 %v105
    %612 = vmatpush.msra.mxu0 %v103
    %613 = vmatpush.msra.mxu0 %v101
    %614 = vmatpush.msra.mxu0 %v99
    %615 = vmatpush.msra.mxu0 %v97
    %616 = vmatpush.msra.mxu0 %v95
    %617 = vmatpush.msra.mxu0 %v93
    %618 = vmatpush.msra.mxu0 %v91
    %619 = vmatpush.msra.mxu0 %v89
    %620 = vmatmul.f32.gmra.mxu0 %v556
    %v621 = vpop.f32.mrf.mxu0
    %v622 = vadd.f32 %v561, %v621
    %623 = vdwg.mxu0
    %624 = vmatpush.msra.mxu0 %v151
    %625 = vmatpush.msra.mxu0 %v149
    %626 = vmatpush.msra.mxu0 %v147
    %627 = vmatpush.msra.mxu0 %v145
    %628 = vmatpush.msra.mxu0 %v143
    %629 = vmatpush.msra.mxu0 %v141
    %630 = vmatpush.msra.mxu0 %v139
    %631 = vmatpush.msra.mxu0 %v137
    %632 = vmatpush.msra.mxu0 %v135
    %633 = vmatpush.msra.mxu0 %v133
    %634 = vmatpush.msra.mxu0 %v131
    %635 = vmatpush.msra.mxu0 %v129
    %636 = vmatpush.msra.mxu0 %v127
    %637 = vmatpush.msra.mxu0 %v125
    %638 = vmatpush.msra.mxu0 %v123
    %639 = vmatpush.msra.mxu0 %v121
    %640 = vmatmul.f32.gmra.mxu0 %v557
    %v641 = vpop.f32.mrf.mxu0
    %v642 = vadd.f32 %v622, %v641
    %643 = vdwg.mxu0
    %644 = vst [vmem:[#allocation11] sm:$0xff] %v602
    %645 = vst [vmem:[#allocation11 + $0x8] sm:$0xff] %v642
    // Predicated region
    $region42: #{tpu_custom_call.1} parent=1 // pred_check
      _
    $region43: #{tpu_custom_call.1} parent=1 // pred_check_branch
      %647 = sbr.rel (0) target = $region45
    $region44: #{tpu_custom_call.1} parent=1 // pred_region
      %649 = vsyncadd [#allocation5], 0
      %s651 = sshll.u32 [#allocation11], 4
      %s652 = int_to_ptr.vmem [resolvable:$true] %s651
      %s653 = sshll.u32 %s6, 4
      %s654 = int_to_ptr.hbm [resolvable:$true] %s653
      %656 = dma.vmem_to_hbm [thread:$0]  %s652, 256, %s654, [#allocation5]
    $region45: #{tpu_custom_call.1} parent=1 // pred_fallthru
      _
    // Predicated region
    $region46: #{tpu_custom_call.1} parent=1 // pred_check
      _
    $region47: #{tpu_custom_call.1} parent=1 // pred_check_branch
      %658 = sbr.rel (0) target = $region49
    $region48: #{tpu_custom_call.1} parent=1 // pred_region
      %660 = dma.done [#allocation5], 256
    $region49: #{tpu_custom_call.1} parent=1 // pred_fallthru
      _
    %661 = vsyncpa [#allocation4], 1
    %662 = vsyncpa [#allocation7], 1
    %663 = vsyncpa [#allocation10], 1
    %664 = vsyncpa [#allocation5], 1

</llo_original>
